<compile_context>
chip_gen: v5e
topology: v5e:2x2
jax: 0.10.0
libtpu: 0.0.40
codegen_flags: <defaults>
</compile_context>

<pallas_src>
import jax
import jax.numpy as jnp
from jax.experimental import pallas as pl
from jax.experimental.pallas import tpu as pltpu

LANE = 128     # batch axis (lanes, in the transposed layout) padded to this
SUBLANE = 8    # feature / output axes padded to this


def _round_up(v, m):
    return ((v + m - 1) // m) * m


def _mlp_kernel(xT_ref, w1bT_ref, w2bT_ref, o_ref):
    # xT_ref:   [F_slot, N_pad]  rows 0..F-1 = x^T, last row = 1.0 (bias row), rest 0
    # w1bT_ref: [H, F_slot]      cols 0..F-1 = W1^T, last col = b1, rest 0
    # w2bT_ref: [O_pad, H + 1]   cols 0..H-1 = W2^T (zero-padded rows), last col = b2
    # o_ref:    [O_pad, N_pad]   lane-dense transposed output slab
    H = w1bT_ref.shape[0]

    xT = xT_ref[...]
    w1bT = w1bT_ref[...]
    w2bT = w2bT_ref[...]

    # Layer 1 on the MXU; b1 is folded in via the ones-row of x^T.
    h = jnp.dot(w1bT, xT, preferred_element_type=jnp.float32)          # [H, N_pad]
    h = jnp.maximum(h, 0.0)                                            # ReLU (VPU, f32)

    # Layer 2 on the MXU; explicit b2 broadcast-add.
    out = jnp.dot(w2bT[:, :H], h, preferred_element_type=jnp.float32)  # [O_pad, N_pad]
    out = out + w2bT[:, H:H + 1]
    o_ref[...] = out.astype(o_ref.dtype)


def pack_params(w1, b1, w2, b2):
    """One-time packing of weights + biases into the kernel's transposed layout.

    w1: [F, H], b1: [H] or [1, H], w2: [H, O], b2: [O] or [1, O]
    (weights stored transposed relative to PyTorch, i.e. [in, out]).
    Returns (w1bT [H, F_slot], w2bT [O_pad, H+1]) in float32.
    """
    F, H = w1.shape
    O = w2.shape[1]
    F_slot = _round_up(F + 1, SUBLANE)          # W1^T columns | zeros | b1 column
    O_pad = _round_up(O, SUBLANE)

    b1 = jnp.reshape(b1, (H,)).astype(jnp.float32)
    b2 = jnp.reshape(b2, (O,)).astype(jnp.float32)

    w1bT = jnp.zeros((H, F_slot), jnp.float32)
    w1bT = w1bT.at[:, :F].set(w1.T.astype(jnp.float32))
    w1bT = w1bT.at[:, F_slot - 1].set(b1)

    w2bT = jnp.zeros((O_pad, H + 1), jnp.float32)
    w2bT = w2bT.at[:O, :H].set(w2.T.astype(jnp.float32))
    w2bT = w2bT.at[:O, H].set(b2)
    return w1bT, w2bT


def net_forward(x, w1bT, w2bT, n_output):
    """Forward pass of Net: relu(x @ W1 + b1) @ W2 + b2, with pre-packed params."""
    N, F = x.shape
    H, F_slot = w1bT.shape
    O_pad = w2bT.shape[0]
    N_pad = _round_up(N, LANE)                  # lane-dense batch axis

    # Per-call prep is only the tiny transpose/pad of x plus the bias ones-row.
    xT = jnp.zeros((F_slot, N_pad), jnp.float32)
    xT = xT.at[:F, :N].set(x.T.astype(jnp.float32))
    xT = xT.at[F_slot - 1, :].set(1.0)          # ones row -> layer-1 bias via matmul

    flops = 2 * N * (F * H + H * n_output)
    bytes_accessed = 4 * (N * F + F * H + H + H * n_output + n_output + N * n_output)

    outT_padded = pl.pallas_call(
        _mlp_kernel,
        out_shape=jax.ShapeDtypeStruct((O_pad, N_pad), jnp.float32),
        in_specs=[
            pl.BlockSpec(memory_space=pltpu.MemorySpace.VMEM),
            pl.BlockSpec(memory_space=pltpu.MemorySpace.VMEM),
            pl.BlockSpec(memory_space=pltpu.MemorySpace.VMEM),
        ],
        out_specs=pl.BlockSpec(memory_space=pltpu.MemorySpace.VMEM),
        cost_estimate=pl.CostEstimate(
            flops=flops, transcendentals=0, bytes_accessed=bytes_accessed),
    )(xT, w1bT, w2bT)

    # Padded rows/columns hold garbage (relu(b1)@W2 + b2); always slice them off.
    return outT_padded[:n_output, :N].T         # [N, O]


def init_params(key, n_feature, n_hidden, n_output, dtype=jnp.float32):
    """Deterministic init mimicking nn.Linear's U(-1/sqrt(fan_in), 1/sqrt(fan_in))."""
    k1, k2, k3, k4 = jax.random.split(key, 4)
    bound1 = 1.0 / jnp.sqrt(n_feature)
    bound2 = 1.0 / jnp.sqrt(n_hidden)
    # stored transposed relative to PyTorch ([out, in] -> [in, out])
    w1 = jax.random.uniform(k1, (n_feature, n_hidden), dtype, -bound1, bound1)
    b1 = jax.random.uniform(k2, (1, n_hidden), dtype, -bound1, bound1)
    w2 = jax.random.uniform(k3, (n_hidden, n_output), dtype, -bound2, bound2)
    b2 = jax.random.uniform(k4, (1, n_output), dtype, -bound2, bound2)
    return w1, b1, w2, b2


if __name__ == "__main__":
    # Shapes match the reference script: Net(n_feature=2, n_hidden=32, n_output=2)
    # fed the full 200-point dataset (two Gaussian blobs at +2 and -2).
    N_FEATURE, N_HIDDEN, N_OUTPUT = 2, 32, 2
    N_PER_CLASS = 100

    key = jax.random.PRNGKey(0)
    kx0, kx1, kp = jax.random.split(key, 3)

    x0 = 2.0 + jax.random.normal(kx0, (N_PER_CLASS, N_FEATURE), jnp.float32)
    x1 = -2.0 + jax.random.normal(kx1, (N_PER_CLASS, N_FEATURE), jnp.float32)
    x = jnp.concatenate([x0, x1], axis=0)

    w1, b1, w2, b2 = init_params(kp, N_FEATURE, N_HIDDEN, N_OUTPUT)
    w1bT, w2bT = pack_params(w1, b1, w2, b2)      # packing hoisted out of forward

    out = jax.block_until_ready(net_forward(x, w1bT, w2bT, N_OUTPUT))

    # Reference check in plain JAX.
    ref = jnp.maximum(x @ w1 + b1, 0.0) @ w2 + b2
    assert out.shape == (2 * N_PER_CLASS, N_OUTPUT)
    assert jnp.allclose(out, ref, atol=1e-5, rtol=1e-5), float(
        jnp.max(jnp.abs(out - ref)))

    print("KERNEL_OK")
</pallas_src>

<mosaic_0001>
module attributes {stable_mosaic.version = 11 : i64} {
  func.func @_mlp_kernel(%arg0: memref<8x256xf32, #tpu.memory_space<vmem>>, %arg1: memref<32x8xf32, #tpu.memory_space<vmem>>, %arg2: memref<8x33xf32, #tpu.memory_space<vmem>>, %arg3: memref<8x256xf32, #tpu.memory_space<vmem>>) attributes {dimension_semantics = [], scalar_prefetch = 0 : i64, scratch_operands = 0 : i64, tpu.core_type = #tpu.core_type<tc>} {
    %c0 = arith.constant 0 : index
    %c0_0 = arith.constant 0 : index
    %0 = vector.load %arg0[%c0, %c0_0] : memref<8x256xf32, #tpu.memory_space<vmem>>, vector<8x256xf32>
    %c0_1 = arith.constant 0 : index
    %c0_2 = arith.constant 0 : index
    %1 = vector.load %arg1[%c0_1, %c0_2] : memref<32x8xf32, #tpu.memory_space<vmem>>, vector<32x8xf32>
    %c0_3 = arith.constant 0 : index
    %c0_4 = arith.constant 0 : index
    %2 = vector.load %arg2[%c0_3, %c0_4] : memref<8x33xf32, #tpu.memory_space<vmem>>, vector<8x33xf32>
    %cst = arith.constant dense<0.000000e+00> : vector<32x256xf32>
    %3 = tpu.matmul %1, %0, %cst {dimension_numbers = #tpu.dot_dimension_numbers<[1], [0], [0], [1], [0, 0, 1, 1], [], []>} : vector<32x8xf32>, vector<8x256xf32>, vector<32x256xf32> -> vector<32x256xf32>
    %cst_5 = arith.constant 0.000000e+00 : f32
    %4 = vector.broadcast %cst_5 : f32 to vector<32x256xf32>
    %5 = arith.maximumf %3, %4 : vector<32x256xf32>
    %6 = vector.extract_strided_slice %2 {offsets = [0, 0], sizes = [8, 32], strides = [1, 1]} : vector<8x33xf32> to vector<8x32xf32>
    %cst_6 = arith.constant dense<0.000000e+00> : vector<8x256xf32>
    %7 = tpu.matmul %6, %5, %cst_6 {dimension_numbers = #tpu.dot_dimension_numbers<[1], [0], [0], [1], [0, 0, 1, 1], [], []>} : vector<8x32xf32>, vector<32x256xf32>, vector<8x256xf32> -> vector<8x256xf32>
    %8 = vector.extract_strided_slice %2 {offsets = [0, 32], sizes = [8, 1], strides = [1, 1]} : vector<8x33xf32> to vector<8x1xf32>
    %9 = vector.broadcast %8 : vector<8x1xf32> to vector<8x256xf32>
    %10 = arith.addf %7, %9 : vector<8x256xf32>
    %c0_7 = arith.constant 0 : index
    %c0_8 = arith.constant 0 : index
    %11 = vector.load %arg3[%c0_7, %c0_8] : memref<8x256xf32, #tpu.memory_space<vmem>>, vector<8x256xf32>
    tpu.vector_store %arg3[%c0_7, %c0_8], %10 {strides = array<i32>} : memref<8x256xf32, #tpu.memory_space<vmem>>, vector<8x256xf32>,
    return
  }
}

</mosaic_0001>

<llo_original>
// kernel: tpu_custom_call.1
$region0: #{tpu_custom_call.1}
  #allocation0 [shape = 'u32[]', space=smem, size = 0x4, offset = 0x4, fixed_abs, tag = 'smem constant byte address 0x4 - core index']
  #allocation1 [shape = 'u32[72,128]{1,0:T(1,128)}', space=vmem, size = 0x9000, scoped, tag = 'internal scratch']
  %s0 = inlined_call_operand.vmem [shape: f32[8,256], index: 0, kind: input, shape index: {}]
  %s1 = inlined_call_operand.vmem [shape: f32[32,8], index: 1, kind: input, shape index: {}]
  %s2 = inlined_call_operand.vmem [shape: f32[8,33], index: 2, kind: input, shape index: {}]
  %s3 = inlined_call_operand.hbm [shape: f32[8,256], index: 3, kind: output, shape index: {}]
  %s4 = sld [smem:[#allocation0]]
  $region22: #{tpu_custom_call.1} parent=0
    _
  %s6 = ssub.s32 1, %s4
  %s7 = scalar_select 0, %s6, %s4
  $region1: #{tpu_custom_call.1} parent=0
    #allocation2 [shape = 'u8[8192]{0}', space=vmem, size = 0x2000, scoped, tag = 'output window, operand 0, single buffered']
    #allocation3 [shape = 's32[1]{0}', space=sflag, size = 0x4, scoped, tag = 'scoped memory for tpu_custom_call.1']
    %8 = vsyncpa [#allocation3], 0
    // Predicated region
    $region2: #{tpu_custom_call.1} parent=1 // pred_check
      _
    $region3: #{tpu_custom_call.1} parent=1 // pred_check_branch
      %10 = sbr.rel (0) target = $region5
    $region4: #{tpu_custom_call.1} parent=1 // pred_region
      _
    $region5: #{tpu_custom_call.1} parent=1 // pred_fallthru
      _
    // Predicated region
    $region6: #{tpu_custom_call.1} parent=1 // pred_check
      _
    $region7: #{tpu_custom_call.1} parent=1 // pred_check_branch
      %12 = sbr.rel (0) target = $region9
    $region8: #{tpu_custom_call.1} parent=1 // pred_region
      _
    $region9: #{tpu_custom_call.1} parent=1 // pred_fallthru
      _
    // Predicated region
    $region10: #{tpu_custom_call.1} parent=1 // pred_check
      _
    $region11: #{tpu_custom_call.1} parent=1 // pred_check_branch
      %14 = sbr.rel (0) target = $region13
    $region12: #{tpu_custom_call.1} parent=1 // pred_region
      _
    $region13: #{tpu_custom_call.1} parent=1 // pred_fallthru
      _
    %v15 = vld [vmem:[%s0] sm:$0xff]
    %v16 = vld [vmem:[%s0 + $0x8] sm:$0xff]
    %v17 = vld [vmem:[%s1] sm:$0xff]
    %v18 = vld [vmem:[%s1 + $0x8] sm:$0xff]
    %v19 = vld [vmem:[%s1 + $0x10] sm:$0xff]
    %v20 = vld [vmem:[%s1 + $0x18] sm:$0xff]
    %v21 = vld [vmem:[%s2] sm:$0xff]
    %vm22 = vcmask 64512
    %v24 = vsel %vm22, %v17, 0
    %v27 = vsel %vm22, %v18, 0
    %v30 = vsel %vm22, %v19, 0
    %v33 = vsel %vm22, %v20, 0
    %35 = vmatpush.msra.mxu0 0.0
    %36 = vmatpush.msra.mxu0 0.0
    %37 = vmatpush.msra.mxu0 0.0
    %38 = vmatpush.msra.mxu0 0.0
    %39 = vmatpush.msra.mxu0 0.0
    %40 = vmatpush.msra.mxu0 0.0
    %41 = vmatpush.msra.mxu0 0.0
    %42 = vmatpush.msra.mxu0 0.0
    %43 = vmatpush.msra.mxu0 0.0
    %44 = vmatpush.msra.mxu0 0.0
    %45 = vmatpush.msra.mxu0 0.0
    %46 = vmatpush.msra.mxu0 0.0
    %47 = vmatpush.msra.mxu0 0.0
    %48 = vmatpush.msra.mxu0 0.0
    %49 = vmatpush.msra.mxu0 0.0
    %50 = vmatpush.msra.mxu0 %v15
    %51 = vmatmul.f32.gmra.mxu0 %v24
    %v52 = vpop.f32.mrf.mxu0
    %v53 = vadd.f32 0.0, %v52
    %54 = vmatmul.f32.gmra.mxu0 %v27
    %v55 = vpop.f32.mrf.mxu0
    %v56 = vadd.f32 0.0, %v55
    %57 = vmatmul.f32.gmra.mxu0 %v30
    %v58 = vpop.f32.mrf.mxu0
    %v59 = vadd.f32 0.0, %v58
    %60 = vmatmul.f32.gmra.mxu0 %v33
    %v61 = vpop.f32.mrf.mxu0
    %v62 = vadd.f32 0.0, %v61
    %63 = vdwg.mxu0
    %64 = vmatpush.msra.mxu0 0.0
    %65 = vmatpush.msra.mxu0 0.0
    %66 = vmatpush.msra.mxu0 0.0
    %67 = vmatpush.msra.mxu0 0.0
    %68 = vmatpush.msra.mxu0 0.0
    %69 = vmatpush.msra.mxu0 0.0
    %70 = vmatpush.msra.mxu0 0.0
    %71 = vmatpush.msra.mxu0 0.0
    %72 = vmatpush.msra.mxu0 0.0
    %73 = vmatpush.msra.mxu0 0.0
    %74 = vmatpush.msra.mxu0 0.0
    %75 = vmatpush.msra.mxu0 0.0
    %76 = vmatpush.msra.mxu0 0.0
    %77 = vmatpush.msra.mxu0 0.0
    %78 = vmatpush.msra.mxu0 0.0
    %79 = vmatpush.msra.mxu0 %v16
    %80 = vmatmul.f32.gmra.mxu0 %v24
    %v81 = vpop.f32.mrf.mxu0
    %v82 = vadd.f32 0.0, %v81
    %83 = vmatmul.f32.gmra.mxu0 %v27
    %v84 = vpop.f32.mrf.mxu0
    %v85 = vadd.f32 0.0, %v84
    %86 = vmatmul.f32.gmra.mxu0 %v30
    %v87 = vpop.f32.mrf.mxu0
    %v88 = vadd.f32 0.0, %v87
    %89 = vmatmul.f32.gmra.mxu0 %v33
    %v90 = vpop.f32.mrf.mxu0
    %v91 = vadd.f32 0.0, %v90
    %92 = vdwg.mxu0
    %v93 = vmax.f32 %v53, 0.0
    %v94 = vmax.f32 %v82, 0.0
    %v95 = vmax.f32 %v56, 0.0
    %v96 = vmax.f32 %v85, 0.0
    %v97 = vmax.f32 %v59, 0.0
    %v98 = vmax.f32 %v88, 0.0
    %v99 = vmax.f32 %v62, 0.0
    %v100 = vmax.f32 %v91, 0.0
    %102 = vset.pattern.permute.xlu0 32
    %103 = vperm.xlu0 %102, %v21
    %v104 = vpop.permute.xlu0 %103
    %vm106 = vcmask 261120
    %v107 = vsel %vm106, %v21, 0
    %109 = vmatpush.msra.mxu0 0.0
    %110 = vmatpush.msra.mxu0 0.0
    %111 = vmatpush.msra.mxu0 0.0
    %112 = vmatpush.msra.mxu0 0.0
    %113 = vmatpush.msra.mxu0 0.0
    %114 = vmatpush.msra.mxu0 0.0
    %115 = vmatpush.msra.mxu0 0.0
    %116 = vmatpush.msra.mxu0 0.0
    %117 = vmatpush.msra.mxu0 0.0
    %118 = vmatpush.msra.mxu0 0.0
    %119 = vmatpush.msra.mxu0 0.0
    %120 = vmatpush.msra.mxu0 0.0
    %121 = vmatpush.msra.mxu0 %v99
    %122 = vmatpush.msra.mxu0 %v97
    %123 = vmatpush.msra.mxu0 %v95
    %124 = vmatpush.msra.mxu0 %v93
    %125 = vmatmul.f32.gmra.mxu0 %v107
    %v126 = vpop.f32.mrf.mxu0
    %v127 = vadd.f32 %v104, %v126
    %128 = vdwg.mxu0
    %129 = vmatpush.msra.mxu0 0.0
    %130 = vmatpush.msra.mxu0 0.0
    %131 = vmatpush.msra.mxu0 0.0
    %132 = vmatpush.msra.mxu0 0.0
    %133 = vmatpush.msra.mxu0 0.0
    %134 = vmatpush.msra.mxu0 0.0
    %135 = vmatpush.msra.mxu0 0.0
    %136 = vmatpush.msra.mxu0 0.0
    %137 = vmatpush.msra.mxu0 0.0
    %138 = vmatpush.msra.mxu0 0.0
    %139 = vmatpush.msra.mxu0 0.0
    %140 = vmatpush.msra.mxu0 0.0
    %141 = vmatpush.msra.mxu0 %v100
    %142 = vmatpush.msra.mxu0 %v98
    %143 = vmatpush.msra.mxu0 %v96
    %144 = vmatpush.msra.mxu0 %v94
    %145 = vmatmul.f32.gmra.mxu0 %v107
    %v146 = vpop.f32.mrf.mxu0
    %v147 = vadd.f32 %v104, %v146
    %148 = vdwg.mxu0
    %149 = vst [vmem:[#allocation2] sm:$0xff] %v127
    %150 = vst [vmem:[#allocation2 + $0x8] sm:$0xff] %v147
    // Predicated region
    $region14: #{tpu_custom_call.1} parent=1 // pred_check
      _
    $region15: #{tpu_custom_call.1} parent=1 // pred_check_branch
      %152 = sbr.rel (0) target = $region17
    $region16: #{tpu_custom_call.1} parent=1 // pred_region
      %154 = vsyncadd [#allocation3], 0
      %s156 = sshll.u32 [#allocation2], 4
      %s157 = int_to_ptr.vmem [resolvable:$true] %s156
      %s158 = sshll.u32 %s3, 4
      %s159 = int_to_ptr.hbm [resolvable:$true] %s158
      %161 = dma.vmem_to_hbm [thread:$0]  %s157, 256, %s159, [#allocation3]
    $region17: #{tpu_custom_call.1} parent=1 // pred_fallthru
      _
    // Predicated region
    $region18: #{tpu_custom_call.1} parent=1 // pred_check
      _
    $region19: #{tpu_custom_call.1} parent=1 // pred_check_branch
      %163 = sbr.rel (0) target = $region21
    $region20: #{tpu_custom_call.1} parent=1 // pred_region
      %165 = dma.done [#allocation3], 256
    $region21: #{tpu_custom_call.1} parent=1 // pred_fallthru
      _
    %166 = vsyncpa [#allocation3], 1

</llo_original>
